<compile_context>
chip_gen: v6e
topology: v6e:2x2x1
jax: 0.10.0
libtpu: 0.0.40
codegen_flags: <defaults>
</compile_context>

<pallas_src>
import functools

import jax
import jax.numpy as jnp
from jax import lax
from jax.experimental import pallas as pl
from jax.experimental.pallas import tpu as pltpu


LN_EPS = 1e-5  # torch.nn.LayerNorm default


def _embed_ln_kernel(tok_ref, pos_ref, seg_ids_ref, seg_tab_ref,
                     gamma_ref, beta_ref, o_ref):
    # tok_ref / pos_ref: (TS, D) tiles. seg_ids_ref: (TS, 1) int32.
    # seg_tab_ref: (n_segments, D) resident. gamma/beta: (1, D) resident.
    e = tok_ref[...].astype(jnp.float32) + pos_ref[...].astype(jnp.float32)

    # Segment embedding: select rows of the VMEM-resident (n_segments, D)
    # table with a broadcast where (n_segments is tiny -> static unrolled).
    seg_ids = seg_ids_ref[...]                         # (TS, 1) int32
    seg_e = jnp.zeros_like(e)
    for s_idx in range(seg_tab_ref.shape[0]):
        row = seg_tab_ref[s_idx:s_idx + 1, :].astype(jnp.float32)   # (1, D)
        seg_e = jnp.where(seg_ids == s_idx, row, seg_e)
    e = e + seg_e

    # LayerNorm over the feature axis.
    mean = jnp.mean(e, axis=-1, keepdims=True)
    cent = e - mean
    var = jnp.mean(cent * cent, axis=-1, keepdims=True)
    normed = cent * lax.rsqrt(var + LN_EPS)
    o_ref[...] = (normed * gamma_ref[...].astype(jnp.float32)
                  + beta_ref[...].astype(jnp.float32)).astype(o_ref.dtype)


@jax.jit
def bert_embedding(x, seg, tok_table, pos_table, seg_table, gamma, beta):
    B, S = x.shape
    _, D = tok_table.shape
    n_segments = seg_table.shape[0]

    # --- token-table gather in the wrapper (XLA gather) ---------------------
    tok_rows = jnp.take(tok_table, x.astype(jnp.int32), axis=0)   # (B, S, D)

    # --- choose token-block size and pad S up to a multiple of it -----------
    TS = min(512, ((S + 7) // 8) * 8)          # multiple of 8, <= 512
    n_s_blocks = (S + TS - 1) // TS
    S_pad = n_s_blocks * TS
    pad_s = S_pad - S

    tok_rows = jnp.pad(tok_rows, ((0, 0), (0, pad_s), (0, 0)))
    seg_p = jnp.pad(seg.astype(jnp.int32), ((0, 0), (0, pad_s)))
    pos_p = jnp.pad(pos_table[:S], ((0, pad_s), (0, 0)))           # (S_pad, D)

    tok_flat = tok_rows.reshape(B * S_pad, D)
    seg_flat = seg_p.reshape(B * S_pad, 1)
    gamma2 = gamma.reshape(1, D)
    beta2 = beta.reshape(1, D)

    grid = (B, n_s_blocks)

    out_flat = pl.pallas_call(
        _embed_ln_kernel,
        out_shape=jax.ShapeDtypeStruct((B * S_pad, D), jnp.float32),
        grid=grid,
        in_specs=[
            # dense gathered token rows, lane/sublane-dense (TS, D) tiles
            pl.BlockSpec((TS, D), lambda b, s: (b * n_s_blocks + s, 0)),
            # positional rows: contiguous, reused across batch
            pl.BlockSpec((TS, D), lambda b, s: (s, 0)),
            # per-token segment ids
            pl.BlockSpec((TS, 1), lambda b, s: (b * n_s_blocks + s, 0)),
            # tiny tables kept fully resident in VMEM (constant index maps)
            pl.BlockSpec((n_segments, D), lambda b, s: (0, 0)),
            pl.BlockSpec((1, D), lambda b, s: (0, 0)),
            pl.BlockSpec((1, D), lambda b, s: (0, 0)),
        ],
        out_specs=pl.BlockSpec((TS, D), lambda b, s: (b * n_s_blocks + s, 0)),
        compiler_params=pltpu.CompilerParams(
            dimension_semantics=("parallel", "parallel")),
    )(tok_flat, pos_p, seg_flat, seg_table, gamma2, beta2)

    return out_flat.reshape(B, S_pad, D)[:, :S, :]


def _reference(x, seg, tok_table, pos_table, seg_table, gamma, beta):
    S = x.shape[1]
    pos = jnp.arange(S, dtype=jnp.int32)[None, :]
    e = tok_table[x] + pos_table[pos] + seg_table[seg]
    mean = jnp.mean(e, axis=-1, keepdims=True)
    var = jnp.mean((e - mean) ** 2, axis=-1, keepdims=True)
    return (e - mean) * lax.rsqrt(var + LN_EPS) * gamma + beta


def _run_case(key, B, S, vocab_size, maxlen, d_model, n_segments):
    k_tok, k_pos, k_seg, k_x, k_s = jax.random.split(key, 5)
    tok_table = jax.random.normal(k_tok, (vocab_size, d_model), jnp.float32)
    pos_table = jax.random.normal(k_pos, (maxlen, d_model), jnp.float32)
    seg_table = jax.random.normal(k_seg, (n_segments, d_model), jnp.float32)
    gamma = jnp.ones((d_model,), jnp.float32)
    beta = jnp.zeros((d_model,), jnp.float32)
    x = jax.random.randint(k_x, (B, S), 0, vocab_size, dtype=jnp.int32)
    seg = jax.random.randint(k_s, (B, S), 0, n_segments, dtype=jnp.int32)

    out = bert_embedding(x, seg, tok_table, pos_table, seg_table, gamma, beta)
    out = jax.block_until_ready(out)
    ref = _reference(x, seg, tok_table, pos_table, seg_table, gamma, beta)
    assert out.shape == (B, S, d_model)
    assert jnp.allclose(out, ref, atol=1e-4, rtol=1e-4), "mismatch vs reference"


if __name__ == "__main__":
    key = jax.random.PRNGKey(0)
    k1, k2 = jax.random.split(key)

    # Small deterministic config (scaled-down Config): vocab=50, maxlen=16,
    # d_model=128, n_segments=2, batch=2, seq=8 (exact multiple of block).
    _run_case(k1, B=2, S=8, vocab_size=50, maxlen=16, d_model=128, n_segments=2)

    # Second case with seq not a multiple of 8 to exercise the padding path.
    _run_case(k2, B=2, S=6, vocab_size=50, maxlen=16, d_model=128, n_segments=2)

    print("KERNEL_OK")
</pallas_src>

<mosaic_0001>
module attributes {stable_mosaic.version = 11 : i64} {
  func.func @_embed_ln_kernel(%arg0: i32, %arg1: i32, %arg2: memref<8x128xf32, #tpu.memory_space<vmem>>, %arg3: memref<8x128xf32, #tpu.memory_space<vmem>>, %arg4: memref<8x1xi32, #tpu.memory_space<vmem>>, %arg5: memref<2x128xf32, #tpu.memory_space<vmem>>, %arg6: memref<1x128xf32, #tpu.memory_space<vmem>>, %arg7: memref<1x128xf32, #tpu.memory_space<vmem>>, %arg8: memref<8x128xf32, #tpu.memory_space<vmem>>) attributes {dimension_semantics = [#tpu.dimension_semantics<parallel>, #tpu.dimension_semantics<parallel>], iteration_bounds = array<i64: 2, 1>, scalar_prefetch = 0 : i64, scratch_operands = 0 : i64, tpu.core_type = #tpu.core_type<tc>, window_params = [{transform_indices = @transform_0, window_bounds = array<i64: 8, 128>}, {transform_indices = @transform_1, window_bounds = array<i64: 8, 128>}, {transform_indices = @transform_2, window_bounds = array<i64: 8, 1>}, {pipeline_mode = #tpu.pipeline_mode<synchronous>, transform_indices = @transform_3, window_bounds = array<i64: 2, 128>}, {pipeline_mode = #tpu.pipeline_mode<synchronous>, transform_indices = @transform_4, window_bounds = array<i64: 1, 128>}, {pipeline_mode = #tpu.pipeline_mode<synchronous>, transform_indices = @transform_5, window_bounds = array<i64: 1, 128>}, {transform_indices = @transform_6, window_bounds = array<i64: 8, 128>}]} {
    %c0 = arith.constant 0 : index
    %c0_0 = arith.constant 0 : index
    %0 = vector.load %arg2[%c0, %c0_0] : memref<8x128xf32, #tpu.memory_space<vmem>>, vector<8x128xf32>
    %c0_1 = arith.constant 0 : index
    %c0_2 = arith.constant 0 : index
    %1 = vector.load %arg3[%c0_1, %c0_2] : memref<8x128xf32, #tpu.memory_space<vmem>>, vector<8x128xf32>
    %2 = arith.addf %0, %1 : vector<8x128xf32>
    %c0_3 = arith.constant 0 : index
    %c0_4 = arith.constant 0 : index
    %3 = vector.load %arg4[%c0_3, %c0_4] : memref<8x1xi32, #tpu.memory_space<vmem>>, vector<8x1xi32>
    %cst = arith.constant 0.000000e+00 : f32
    %4 = vector.broadcast %cst : f32 to vector<8x128xf32>
    %c0_5 = arith.constant 0 : index
    %c0_6 = arith.constant 0 : index
    %5 = vector.load %arg5[%c0_5, %c0_6] : memref<2x128xf32, #tpu.memory_space<vmem>>, vector<1x128xf32>
    %c0_i32 = arith.constant 0 : i32
    %6 = vector.broadcast %c0_i32 : i32 to vector<8x1xi32>
    %7 = arith.cmpi eq, %3, %6 : vector<8x1xi32>
    %8 = vector.shape_cast %7 : vector<8x1xi1> to vector<8x1xi1>
    %9 = vector.broadcast %8 : vector<8x1xi1> to vector<8x128xi1>
    %10 = vector.shape_cast %5 : vector<1x128xf32> to vector<1x128xf32>
    %11 = vector.broadcast %10 : vector<1x128xf32> to vector<8x128xf32>
    %12 = arith.select %9, %11, %4 : vector<8x128xi1>, vector<8x128xf32>
    %c1 = arith.constant 1 : index
    %c0_7 = arith.constant 0 : index
    %13 = vector.load %arg5[%c1, %c0_7] : memref<2x128xf32, #tpu.memory_space<vmem>>, vector<1x128xf32>
    %c1_i32 = arith.constant 1 : i32
    %14 = vector.broadcast %c1_i32 : i32 to vector<8x1xi32>
    %15 = arith.cmpi eq, %3, %14 : vector<8x1xi32>
    %16 = vector.shape_cast %15 : vector<8x1xi1> to vector<8x1xi1>
    %17 = vector.broadcast %16 : vector<8x1xi1> to vector<8x128xi1>
    %18 = vector.shape_cast %13 : vector<1x128xf32> to vector<1x128xf32>
    %19 = vector.broadcast %18 : vector<1x128xf32> to vector<8x128xf32>
    %20 = arith.select %17, %19, %12 : vector<8x128xi1>, vector<8x128xf32>
    %21 = arith.addf %2, %20 : vector<8x128xf32>
    %cst_8 = arith.constant dense<0.000000e+00> : vector<8xf32>
    %22 = vector.multi_reduction <add>, %21, %cst_8 [1] : vector<8x128xf32> to vector<8xf32>
    %23 = vector.shape_cast %22 : vector<8xf32> to vector<8x1xf32>
    %cst_9 = arith.constant 1.280000e+02 : f32
    %24 = vector.broadcast %cst_9 : f32 to vector<8x1xf32>
    %25 = arith.divf %23, %24 : vector<8x1xf32>
    %26 = vector.broadcast %25 : vector<8x1xf32> to vector<8x128xf32>
    %27 = arith.subf %21, %26 : vector<8x128xf32>
    %28 = arith.mulf %27, %27 : vector<8x128xf32>
    %cst_10 = arith.constant dense<0.000000e+00> : vector<8xf32>
    %29 = vector.multi_reduction <add>, %28, %cst_10 [1] : vector<8x128xf32> to vector<8xf32>
    %30 = vector.shape_cast %29 : vector<8xf32> to vector<8x1xf32>
    %cst_11 = arith.constant 1.280000e+02 : f32
    %31 = vector.broadcast %cst_11 : f32 to vector<8x1xf32>
    %32 = arith.divf %30, %31 : vector<8x1xf32>
    %cst_12 = arith.constant 9.99999974E-6 : f32
    %33 = vector.broadcast %cst_12 : f32 to vector<8x1xf32>
    %34 = arith.addf %32, %33 : vector<8x1xf32>
    %35 = math.rsqrt %34 : vector<8x1xf32>
    %36 = vector.broadcast %35 : vector<8x1xf32> to vector<8x128xf32>
    %37 = arith.mulf %27, %36 : vector<8x128xf32>
    %c0_13 = arith.constant 0 : index
    %c0_14 = arith.constant 0 : index
    %38 = vector.load %arg6[%c0_13, %c0_14] : memref<1x128xf32, #tpu.memory_space<vmem>>, vector<1x128xf32>
    %39 = vector.broadcast %38 : vector<1x128xf32> to vector<8x128xf32>
    %40 = arith.mulf %37, %39 : vector<8x128xf32>
    %c0_15 = arith.constant 0 : index
    %c0_16 = arith.constant 0 : index
    %41 = vector.load %arg7[%c0_15, %c0_16] : memref<1x128xf32, #tpu.memory_space<vmem>>, vector<1x128xf32>
    %42 = vector.broadcast %41 : vector<1x128xf32> to vector<8x128xf32>
    %43 = arith.addf %40, %42 : vector<8x128xf32>
    %c0_17 = arith.constant 0 : index
    %c0_18 = arith.constant 0 : index
    %44 = vector.load %arg8[%c0_17, %c0_18] : memref<8x128xf32, #tpu.memory_space<vmem>>, vector<8x128xf32>
    tpu.vector_store %arg8[%c0_17, %c0_18], %43 {strides = array<i32>} : memref<8x128xf32, #tpu.memory_space<vmem>>, vector<8x128xf32>,
    return
  }
  func.func @transform_0(%arg0: i32, %arg1: i32) -> (i32, i32) {
    %c1_i32 = arith.constant 1 : i32
    %0 = arith.muli %arg0, %c1_i32 : i32
    %1 = arith.addi %0, %arg1 : i32
    %c0_i32 = arith.constant 0 : i32
    %c0_i32_0 = arith.constant 0 : i32
    return %1, %c0_i32 : i32, i32
  }
  func.func @transform_1(%arg0: i32, %arg1: i32) -> (i32, i32) {
    %c0_i32 = arith.constant 0 : i32
    %c0_i32_0 = arith.constant 0 : i32
    return %arg1, %c0_i32 : i32, i32
  }
  func.func @transform_2(%arg0: i32, %arg1: i32) -> (i32, i32) {
    %c1_i32 = arith.constant 1 : i32
    %0 = arith.muli %arg0, %c1_i32 : i32
    %1 = arith.addi %0, %arg1 : i32
    %c0_i32 = arith.constant 0 : i32
    %c0_i32_0 = arith.constant 0 : i32
    return %1, %c0_i32 : i32, i32
  }
  func.func @transform_3(%arg0: i32, %arg1: i32) -> (i32, i32) {
    %c0_i32 = arith.constant 0 : i32
    %c0_i32_0 = arith.constant 0 : i32
    %c0_i32_1 = arith.constant 0 : i32
    return %c0_i32, %c0_i32_0 : i32, i32
  }
  func.func @transform_4(%arg0: i32, %arg1: i32) -> (i32, i32) {
    %c0_i32 = arith.constant 0 : i32
    %c0_i32_0 = arith.constant 0 : i32
    %c0_i32_1 = arith.constant 0 : i32
    return %c0_i32, %c0_i32_0 : i32, i32
  }
  func.func @transform_5(%arg0: i32, %arg1: i32) -> (i32, i32) {
    %c0_i32 = arith.constant 0 : i32
    %c0_i32_0 = arith.constant 0 : i32
    %c0_i32_1 = arith.constant 0 : i32
    return %c0_i32, %c0_i32_0 : i32, i32
  }
  func.func @transform_6(%arg0: i32, %arg1: i32) -> (i32, i32) {
    %c1_i32 = arith.constant 1 : i32
    %0 = arith.muli %arg0, %c1_i32 : i32
    %1 = arith.addi %0, %arg1 : i32
    %c0_i32 = arith.constant 0 : i32
    %c0_i32_0 = arith.constant 0 : i32
    return %1, %c0_i32 : i32, i32
  }
}

</mosaic_0001>

<llo_original>
// kernel: bert_embedding.1
$region0: #{bert_embedding.1}
  #allocation0 [shape = 'u32[]', space=smem, size = 0x4, offset = 0x4, fixed_abs, tag = 'smem constant byte address 0x4 - core index']
  #allocation1 [shape = 'u32[144,128]{1,0:T(1,128)}', space=vmem, size = 0x12000, scoped, tag = 'internal scratch']
  %s0 = inlined_call_operand.vmem [shape: f32[16,128], index: 0, kind: input, shape index: {}]
  %s1 = inlined_call_operand.vmem [shape: f32[8,128], index: 1, kind: input, shape index: {}]
  %s2 = inlined_call_operand.vmem [shape: s32[16,1], index: 2, kind: input, shape index: {}]
  %s3 = inlined_call_operand.vmem [shape: f32[2,128], index: 3, kind: input, shape index: {}]
  %s4 = inlined_call_operand.vmem [shape: f32[1,128], index: 4, kind: input, shape index: {}]
  %s5 = inlined_call_operand.vmem [shape: f32[1,128], index: 5, kind: input, shape index: {}]
  %s6 = inlined_call_operand.hbm [shape: f32[16,128], index: 6, kind: output, shape index: {}]
  %s7 = sld [smem:[#allocation0]]
  $region57: #{bert_embedding.1} parent=0
    _
  %s9 = ssub.s32 1, %s7
  %s10 = scalar_select 0, %s9, %s7
  $region1: #{bert_embedding.1} parent=0
    #allocation2 [shape = 'u8[8192]{0}', space=vmem, size = 0x2000, scoped, tag = 'output window, operand 0']
    #allocation3 [shape = 's32[2]{0}', space=sflag, size = 0x8, scoped, tag = 'scoped memory for bert_embedding.1']
    %11 = vsyncpa [#allocation3], 0
    %s12 = scalar_lea.sflag [#allocation3], 1
    %13 = vsyncpa %s12, 0
    loop: start=0, step=1, limit=4
    $region2: #{bert_embedding.1} parent=1 // loop_pre_header
      _
    $region3: #{bert_embedding.1} parent=1 // loop_header
      %s15 = sphi 0, %s19
      %p16 = scmp.ge.s32.totalorder %s15, 4
      %s22 = sphi 0, %s34
      %s23 = sphi 0, %s30
      %s24 = sphi 0, %s22
      %s25 = sphi 0, %s23
      %s26 = sphi 0, %s24
      %s27 = sphi 0, %s25
      %s39 = sphi 0, %s41
      %s42 = sphi 0, %s39
      %s43 = sphi 0, %s42
      %s59 = sphi 0, %s43
      %s65 = sphi 0, %s67
      %s68 = sphi 0, %s65
      %s69 = sphi 0, %s68
      %s85 = sphi 0, %s69
      %s93 = sphi 0, %s95
      %s96 = sphi 0, %s93
      %s97 = sphi 0, %s96
      %s113 = sphi 0, %s97
      %s117 = sphi 0, %s117
      %s119 = sphi 0, %s117
      %s120 = sphi 0, %s119
      %s134 = sphi 0, %s120
      %s138 = sphi 0, %s138
      %s140 = sphi 0, %s138
      %s141 = sphi 0, %s140
      %s155 = sphi 0, %s141
      %s159 = sphi 0, %s159
      %s161 = sphi 0, %s159
      %s162 = sphi 0, %s161
      %s176 = sphi 0, %s162
      %s184 = sphi 0, %s186
      %s187 = sphi 0, %s184
      %s188 = sphi 0, %s187
      %s204 = sphi 0, %s188
    $region4: #{bert_embedding.1} parent=1 // loop_header_branch
      %18 = sbr.rel (%p16) target = $region8
    $region5: #{bert_embedding.1} parent=1 // loop_body
      %s20 = ssub.s32 %s15, 1
      %s21 = ssub.s32 %s15, 2
      %s28 = sadd.s32 1, %s23
      %p29 = scmp.ge.s32.totalorder %s28, 1
      %s30 = scalar_select %p29, 0, %s28
      %s31 = sadd.s32 1, %s22
      %s32 = scalar_select %p29, %s31, %s22
      %p33 = scmp.ge.s32.totalorder %s32, 2
      %s34 = scalar_select %p33, 0, %s32
      %s35 = sadd.s32 %s22, %s23
      %s36 = sadd.s32 %s34, %s30
      %s37 = ssub.s32 %s35, %s36
      %p38 = scmp.eq.s32.totalorder %s37, 0
      %s40 = sadd.s32 %s39, 1
      %s41 = scalar_select %p38, %s39, %s40
      %p44 = pneg %p38
      %p45 = scmp.eq.s32.totalorder %s15, 1
      %p46 = por %p44, %p45
      %p47 = scmp.ne.s32.totalorder %s39, %s42
      %p48 = scmp.eq.s32.totalorder %s15, 0
      %p49 = por %p47, %p48
      %p50 = scmp.ne.s32.totalorder %s39, %s42
      %p51 = scmp.eq.s32.totalorder %s20, 1
      %p52 = por %p50, %p51
      %p53 = scmp.ne.s32.totalorder %s42, %s43
      %p54 = scmp.eq.s32.totalorder %s20, 0
      %p55 = por %p53, %p54
      %p56 = scmp.ne.s32.totalorder %s42, %s43
      %p57 = scmp.eq.s32.totalorder %s21, 1
      %p58 = por %p56, %p57
      %p60 = scmp.ne.s32.totalorder %s43, %s59
      %p61 = scmp.eq.s32.totalorder %s21, 0
      %p62 = por %p60, %p61
      %s63 = ssub.s32 %s23, %s30
      %p64 = scmp.eq.s32.totalorder %s63, 0
      %s66 = sadd.s32 %s65, 1
      %s67 = scalar_select %p64, %s65, %s66
      %p70 = pneg %p64
      %p71 = scmp.eq.s32.totalorder %s15, 1
      %p72 = por %p70, %p71
      %p73 = scmp.ne.s32.totalorder %s65, %s68
      %p74 = scmp.eq.s32.totalorder %s15, 0
      %p75 = por %p73, %p74
      %p76 = scmp.ne.s32.totalorder %s65, %s68
      %p77 = scmp.eq.s32.totalorder %s20, 1
      %p78 = por %p76, %p77
      %p79 = scmp.ne.s32.totalorder %s68, %s69
      %p80 = scmp.eq.s32.totalorder %s20, 0
      %p81 = por %p79, %p80
      %p82 = scmp.ne.s32.totalorder %s68, %s69
      %p83 = scmp.eq.s32.totalorder %s21, 1
      %p84 = por %p82, %p83
      %p86 = scmp.ne.s32.totalorder %s69, %s85
      %p87 = scmp.eq.s32.totalorder %s21, 0
      %p88 = por %p86, %p87
      %s89 = sadd.s32 %s22, %s23
      %s90 = sadd.s32 %s34, %s30
      %s91 = ssub.s32 %s89, %s90
      %p92 = scmp.eq.s32.totalorder %s91, 0
      %s94 = sadd.s32 %s93, 1
      %s95 = scalar_select %p92, %s93, %s94
      %p98 = pneg %p92
      %p99 = scmp.eq.s32.totalorder %s15, 1
      %p100 = por %p98, %p99
      %p101 = scmp.ne.s32.totalorder %s93, %s96
      %p102 = scmp.eq.s32.totalorder %s15, 0
      %p103 = por %p101, %p102
      %p104 = scmp.ne.s32.totalorder %s93, %s96
      %p105 = scmp.eq.s32.totalorder %s20, 1
      %p106 = por %p104, %p105
      %p107 = scmp.ne.s32.totalorder %s96, %s97
      %p108 = scmp.eq.s32.totalorder %s20, 0
      %p109 = por %p107, %p108
      %p110 = scmp.ne.s32.totalorder %s96, %s97
      %p111 = scmp.eq.s32.totalorder %s21, 1
      %p112 = por %p110, %p111
      %p114 = scmp.ne.s32.totalorder %s97, %s113
      %p115 = scmp.eq.s32.totalorder %s21, 0
      %p116 = por %p114, %p115
      %s118 = sadd.s32 %s117, 1
      %p121 = scmp.eq.s32.totalorder %s15, 1
      %p122 = scmp.ne.s32.totalorder %s117, %s119
      %p123 = scmp.eq.s32.totalorder %s15, 0
      %p124 = por %p122, %p123
      %p125 = scmp.ne.s32.totalorder %s117, %s119
      %p126 = scmp.eq.s32.totalorder %s20, 1
      %p127 = por %p125, %p126
      %p128 = scmp.ne.s32.totalorder %s119, %s120
      %p129 = scmp.eq.s32.totalorder %s20, 0
      %p130 = por %p128, %p129
      %p131 = scmp.ne.s32.totalorder %s119, %s120
      %p132 = scmp.eq.s32.totalorder %s21, 1
      %p133 = por %p131, %p132
      %p135 = scmp.ne.s32.totalorder %s120, %s134
      %p136 = scmp.eq.s32.totalorder %s21, 0
      %p137 = por %p135, %p136
      %s139 = sadd.s32 %s138, 1
      %p142 = scmp.eq.s32.totalorder %s15, 1
      %p143 = scmp.ne.s32.totalorder %s138, %s140
      %p144 = scmp.eq.s32.totalorder %s15, 0
      %p145 = por %p143, %p144
      %p146 = scmp.ne.s32.totalorder %s138, %s140
      %p147 = scmp.eq.s32.totalorder %s20, 1
      %p148 = por %p146, %p147
      %p149 = scmp.ne.s32.totalorder %s140, %s141
      %p150 = scmp.eq.s32.totalorder %s20, 0
      %p151 = por %p149, %p150
      %p152 = scmp.ne.s32.totalorder %s140, %s141
      %p153 = scmp.eq.s32.totalorder %s21, 1
      %p154 = por %p152, %p153
      %p156 = scmp.ne.s32.totalorder %s141, %s155
      %p157 = scmp.eq.s32.totalorder %s21, 0
      %p158 = por %p156, %p157
      %s160 = sadd.s32 %s159, 1
      %p163 = scmp.eq.s32.totalorder %s15, 1
      %p164 = scmp.ne.s32.totalorder %s159, %s161
      %p165 = scmp.eq.s32.totalorder %s15, 0
      %p166 = por %p164, %p165
      %p167 = scmp.ne.s32.totalorder %s159, %s161
      %p168 = scmp.eq.s32.totalorder %s20, 1
      %p169 = por %p167, %p168
      %p170 = scmp.ne.s32.totalorder %s161, %s162
      %p171 = scmp.eq.s32.totalorder %s20, 0
      %p172 = por %p170, %p171
      %p173 = scmp.ne.s32.totalorder %s161, %s162
      %p174 = scmp.eq.s32.totalorder %s21, 1
      %p175 = por %p173, %p174
      %p177 = scmp.ne.s32.totalorder %s162, %s176
      %p178 = scmp.eq.s32.totalorder %s21, 0
      %p179 = por %p177, %p178
      %s180 = sadd.s32 %s22, %s23
      %s181 = sadd.s32 %s34, %s30
      %s182 = ssub.s32 %s180, %s181
      %p183 = scmp.eq.s32.totalorder %s182, 0
      %s185 = sadd.s32 %s184, 1
      %s186 = scalar_select %p183, %s184, %s185
      %p189 = pneg %p183
      %p190 = scmp.eq.s32.totalorder %s15, 1
      %p191 = por %p189, %p190
      %p192 = scmp.ne.s32.totalorder %s184, %s187
      %p193 = scmp.eq.s32.totalorder %s15, 0
      %p194 = por %p192, %p193
      %p195 = scmp.ne.s32.totalorder %s184, %s187
      %p196 = scmp.eq.s32.totalorder %s20, 1
      %p197 = por %p195, %p196
      %p198 = scmp.ne.s32.totalorder %s187, %s188
      %p199 = scmp.eq.s32.totalorder %s20, 0
      %p200 = por %p198, %p199
      %p201 = scmp.ne.s32.totalorder %s187, %s188
      %p202 = scmp.eq.s32.totalorder %s21, 1
      %p203 = por %p201, %p202
      %p205 = scmp.ne.s32.totalorder %s188, %s204
      %p206 = scmp.eq.s32.totalorder %s21, 0
      %p207 = por %p205, %p206
      %p208 = scmp.le.s32.totalorder 1, %s15
      %p209 = scmp.lt.s32.totalorder %s15, 3
      %p210 = pnand %p208, %p209
      %p211 = pneg %p210
      // Predicated region
      $region9: #{bert_embedding.1} parent=5 // pred_check
        _
      $region10: #{bert_embedding.1} parent=5 // pred_check_branch
        %213 = sbr.rel (%p210) target = $region12
      $region11: #{bert_embedding.1} parent=5 // pred_region
        %s214 = ssub.s32 %s15, 1
        // Predicated region
        $region13: #{bert_embedding.1} parent=11 // pred_check
          %p215 = pneg %p81
        $region14: #{bert_embedding.1} parent=11 // pred_check_branch
          %217 = sbr.rel (%p215) target = $region16
        $region15: #{bert_embedding.1} parent=11 // pred_region
          %p218 = scmp.lt.s32.totalorder %s25, 0
          %s219 = scalar_select %p218, %s25, 0
          %s220 = smul.addr %s219, 8
          %s221 = scalar_lea.vmem %s1, %s220
        $region16: #{bert_embedding.1} parent=11 // pred_fallthru
          _
        // Predicated region
        $region17: #{bert_embedding.1} parent=11 // pred_check
          %p222 = pneg %p130
        $region18: #{bert_embedding.1} parent=11 // pred_check_branch
          %224 = sbr.rel (%p222) target = $region20
        $region19: #{bert_embedding.1} parent=11 // pred_region
          _
        $region20: #{bert_embedding.1} parent=11 // pred_fallthru
          _
        // Predicated region
        $region21: #{bert_embedding.1} parent=11 // pred_check
          %p225 = pneg %p151
        $region22: #{bert_embedding.1} parent=11 // pred_check_branch
          %227 = sbr.rel (%p225) target = $region24
        $region23: #{bert_embedding.1} parent=11 // pred_region
          _
        $region24: #{bert_embedding.1} parent=11 // pred_fallthru
          _
        // Predicated region
        $region25: #{bert_embedding.1} parent=11 // pred_check
          %p228 = pneg %p172
        $region26: #{bert_embedding.1} parent=11 // pred_check_branch
          %230 = sbr.rel (%p228) target = $region28
        $region27: #{bert_embedding.1} parent=11 // pred_region
          _
        $region28: #{bert_embedding.1} parent=11 // pred_fallthru
          _
      $region12: #{bert_embedding.1} parent=5 // pred_fallthru
        _
      %p231 = scmp.lt.s32.totalorder %s15, 2
      // Predicated region
      $region29: #{bert_embedding.1} parent=5 // pred_check
        %p232 = pneg %p231
      $region30: #{bert_embedding.1} parent=5 // pred_check_branch
        %234 = sbr.rel (%p232) target = $region32
      $region31: #{bert_embedding.1} parent=5 // pred_region
        // Predicated region
        $region33: #{bert_embedding.1} parent=31 // pred_check
          %p235 = pneg %p49
        $region34: #{bert_embedding.1} parent=31 // pred_check_branch
          %237 = sbr.rel (%p235) target = $region36
        $region35: #{bert_embedding.1} parent=31 // pred_region
          %s238 = sadd.s32 %s22, %s23
          %p239 = scmp.lt.s32.totalorder %s238, 1
          %s240 = scalar_select %p239, %s238, 1
          %s241 = smul.addr %s240, 8
          %s242 = scalar_lea.vmem %s0, %s241
          %s243 = sadd.s32 %s22, %s23
        $region36: #{bert_embedding.1} parent=31 // pred_fallthru
          _
        // Predicated region
        $region37: #{bert_embedding.1} parent=31 // pred_check
          %p244 = pneg %p103
        $region38: #{bert_embedding.1} parent=31 // pred_check_branch
          %246 = sbr.rel (%p244) target = $region40
        $region39: #{bert_embedding.1} parent=31 // pred_region
          %s247 = sadd.s32 %s22, %s23
          %p248 = scmp.lt.s32.totalorder %s247, 1
          %s249 = scalar_select %p248, %s247, 1
          %s250 = smul.addr %s249, 8
          %s251 = scalar_lea.vmem %s2, %s250
          %s252 = sadd.s32 %s22, %s23
        $region40: #{bert_embedding.1} parent=31 // pred_fallthru
          _
      $region32: #{bert_embedding.1} parent=5 // pred_fallthru
        _
      %p253 = scmp.le.s32.totalorder 1, %s15
      %p254 = scmp.lt.s32.totalorder %s15, 3
      %p255 = pnand %p253, %p254
      %p256 = pneg %p255
      // Predicated region
      $region41: #{bert_embedding.1} parent=5 // pred_check
        _
      $region42: #{bert_embedding.1} parent=5 // pred_check_branch
        %258 = sbr.rel (%p255) target = $region44
      $region43: #{bert_embedding.1} parent=5 // pred_region
        %s259 = ssub.s32 %s15, 1
        %s260 = sadd.s32 %s24, %s25
        %p261 = scmp.lt.s32.totalorder %s260, 1
        %s262 = scalar_select %p261, %s260, 1
        %s263 = smul.addr %s262, 8
        %s264 = scalar_lea.vmem %s0, %s263
        %p265 = pneg %p55
        %p266 = pneg %p52
        %p267 = scmp.lt.s32.totalorder %s25, 0
        %s268 = scalar_select %p267, %s25, 0
        %s269 = smul.addr %s268, 8
        %s270 = scalar_lea.vmem %s1, %s269
        %p271 = pneg %p81
        %p272 = pneg %p78
        %s273 = sadd.s32 %s24, %s25
        %p274 = scmp.lt.s32.totalorder %s273, 1
        %s275 = scalar_select %p274, %s273, 1
        %s276 = smul.addr %s275, 8
        %s277 = scalar_lea.vmem %s2, %s276
        %p278 = pneg %p109
        %p279 = pneg %p106
        %p280 = pneg %p130
        %p281 = pneg %p127
        %p282 = pneg %p151
        %p283 = pneg %p148
        %p284 = pneg %p172
        %p285 = pneg %p169
        %p286 = pneg %p200
        %p287 = pneg %p197
        %s288 = sand.u32 %s187, 1
        %s289 = scalar_lea.sflag [#allocation3], %s288
        %s290 = sand.u32 %s187, 1
        %s291 = smul.addr %s290, 8
        %s292 = scalar_lea.vmem [#allocation2], %s291
        %s293 = sadd.s32 %s24, %s25
        %p294 = scmp.lt.s32.totalorder %s293, 1
        %s295 = scalar_select %p294, %s293, 1
        %s296 = smul.addr %s295, 8
        %s297 = scalar_lea.vmem %s0, %s296
        %s298 = sadd.s32 %s24, %s25
        %p299 = scmp.lt.s32.totalorder %s25, 0
        %s300 = scalar_select %p299, %s25, 0
        %s301 = smul.addr %s300, 8
        %s302 = scalar_lea.vmem %s1, %s301
        %s303 = sadd.s32 %s24, %s25
        %p304 = scmp.lt.s32.totalorder %s303, 1
        %s305 = scalar_select %p304, %s303, 1
        %s306 = smul.addr %s305, 8
        %s307 = scalar_lea.vmem %s2, %s306
        %s308 = sadd.s32 %s24, %s25
        %s309 = sadd.s32 %s24, %s25
        %v310 = vld [vmem:[%s297] sm:$0xff]
        %v311 = vld [vmem:[%s302] sm:$0xff]
        %v312 = vadd.f32 %v310, %v311
        %v313 = vld [vmem:[%s307] sm:$0xff]
        %v314 = vld [vmem:[%s3] sm:$0x1]
        %vm315 = vcmp.eq.s32.totalorder %v313, 0
        %v316 = vsel %vm315, 1, 0
        %317 = vset.pattern.permute.xlu0 0
        %318 = vperm.xlu0 %317, %v316
        %v319 = vpop.permute.xlu0 %318
        %vm320 = vcmp.eq.s32.totalorder %v319, 1
        %v321 = vlaneseq
        %v322 = vshrl.u32 %v321, 7
        %v323 = vsub.s32 0, %v322
        %v324 = vrot.slane %v314, %v323
        %v325 = vsel %vm320, %v324, 0.0
        %v326 = vld [vmem:[%s3 + $0x1] sm:$0x1]
        %vm327 = vcmp.eq.s32.totalorder %v313, 1
        %v328 = vsel %vm327, 1, 0
        %329 = vset.pattern.permute.xlu0 0
        %330 = vperm.xlu0 %329, %v328
        %v331 = vpop.permute.xlu0 %330
        %vm332 = vcmp.eq.s32.totalorder %v331, 1
        %v333 = vlaneseq
        %v334 = vshrl.u32 %v333, 7
        %v335 = vsub.s32 0, %v334
        %v336 = vrot.slane %v326, %v335
        %v337 = vsel %vm332, %v336, %v325
        %v338 = vadd.f32 %v312, %v337
        %339 = vadd.xlane.f32.xlu0 %v338
        %v340 = vpop.xlane.xlu0 %339
        %v341 = vrcp.pop 128.0
        %v342 = vmul.f32 %v340, %v341
        %v343 = vsub.f32 %v338, %v342
        %v344 = vmul.f32 %v343, %v343
        %345 = vadd.xlane.f32.xlu0 %v344
        %v346 = vpop.xlane.xlu0 %345
        %v347 = vmul.f32 %v346, %v341
        %v348 = vadd.f32 %v347, 1e-05
        %v349 = vrsqrt.pop %v348
        %v350 = vmul.f32 %v343, %v349
        %v351 = vld [vmem:[%s4] sm:$0x1]
        %v353 = vlaneseq
        %v354 = vshrl.u32 %v353, 7
        %v355 = vsub.s32 0, %v354
        %v356 = vrot.slane %v351, %v355
        %v358 = vmul.f32 %v350, %v356
        %v359 = vld [vmem:[%s5] sm:$0x1]
        %v361 = vlaneseq
        %v362 = vshrl.u32 %v361, 7
        %v363 = vsub.s32 0, %v362
        %v364 = vrot.slane %v359, %v363
        %v366 = vadd.f32 %v358, %v364
        %367 = vst [vmem:[%s292] sm:$0xff] %v366
        %s368 = sand.u32 %s187, 1
        %s369 = scalar_lea.sflag [#allocation3], %s368
        %s370 = sand.u32 %s187, 1
        %s371 = smul.addr %s370, 8
        %s372 = scalar_lea.vmem [#allocation2], %s371
        // Predicated region
        $region45: #{bert_embedding.1} parent=43 // pred_check
          %p373 = pneg %p197
        $region46: #{bert_embedding.1} parent=43 // pred_check_branch
          %375 = sbr.rel (%p373) target = $region48
        $region47: #{bert_embedding.1} parent=43 // pred_region
          %s376 = sadd.s32 %s24, %s25
          %s378 = ssub.s32 128, 128
          %379 = vsyncadd %s369, %s378
          %s380 = smul.addr %s376, 128
          %s381 = scalar_lea.hbm %s6, %s380
          %s383 = sshll.u32 %s372, 4
          %s384 = int_to_ptr.vmem [resolvable:$true] %s383
          %386 = dma.vmem_to_hbm [thread:$0]  %s384, 128, %s381, %s369
        $region48: #{bert_embedding.1} parent=43 // pred_fallthru
          _
      $region44: #{bert_embedding.1} parent=5 // pred_fallthru
        _
      %p387 = scmp.le.s32.totalorder 2, %s15
      // Predicated region
      $region49: #{bert_embedding.1} parent=5 // pred_check
        %p388 = pneg %p387
      $region50: #{bert_embedding.1} parent=5 // pred_check_branch
        %390 = sbr.rel (%p388) target = $region52
      $region51: #{bert_embedding.1} parent=5 // pred_region
        %s391 = ssub.s32 %s15, 2
        // Predicated region
        $region53: #{bert_embedding.1} parent=51 // pred_check
          %p392 = pneg %p203
        $region54: #{bert_embedding.1} parent=51 // pred_check_branch
          %394 = sbr.rel (%p392) target = $region56
        $region55: #{bert_embedding.1} parent=51 // pred_region
          %s395 = sand.u32 %s188, 1
          %s396 = scalar_lea.sflag [#allocation3], %s395
          %s397 = sand.u32 %s188, 1
          %s398 = smul.addr %s397, 8
          %s399 = scalar_lea.vmem [#allocation2], %s398
          %400 = dma.done %s396, 128
        $region56: #{bert_embedding.1} parent=51 // pred_fallthru
          _
      $region52: #{bert_embedding.1} parent=5 // pred_fallthru
        _
    $region6: #{bert_embedding.1} parent=1 // loop_footer
      %s19 = sadd.s32 1, %s15
    $region7: #{bert_embedding.1} parent=1 // loop_footer_branch
      %14 = sbr.rel target = $region3
    $region8: #{bert_embedding.1} parent=1 // loop_exit
      _
    %401 = vsyncpa [#allocation3], 1
    %s402 = scalar_lea.sflag [#allocation3], 1
    %403 = vsyncpa %s402, 1

</llo_original>
